<compile_context>
chip_gen: v6e
topology: v6e:2x2x1
jax: 0.10.0
libtpu: 0.0.40
codegen_flags: <defaults>
</compile_context>

<pallas_src>
import functools

import jax
import jax.numpy as jnp
import numpy as np
from jax.experimental import pallas as pl
from jax.experimental.pallas import tpu as pltpu


# ----------------------------------------------------------------------------
# Pallas kernel: (im2col patches) @ W + bias -> GroupNorm -> affine -> ReLU,
# optionally fused with the final spatial mean (last layer).
# ----------------------------------------------------------------------------
def _group_broadcast_sum(v, num_groups):
    """v: (B, C) f32 -> per-group channel sums broadcast back to (B, C)."""
    Bt, C = v.shape
    cg = C // num_groups
    parts = []
    for g in range(num_groups):
        sg = jnp.sum(v[:, g * cg:(g + 1) * cg], axis=-1, keepdims=True)
        parts.append(jnp.broadcast_to(sg, (Bt, cg)))
    return jnp.concatenate(parts, axis=-1)


def fused_conv_gn_relu_kernel(p_ref, w_ref, pb_ref, o_ref, *, num_groups, eps,
                              fuse_mean, batch, rows_per_batch):
    """p_ref: (R, K) bf16 with R = batch * rows_per_batch; w_ref: (K, C) bf16;
    pb_ref: (3, C) f32 packed [bias; gamma; beta].
    o_ref: (R, C) bf16 for intermediate layers, or (batch, C) f32 when
    fuse_mean (last layer, spatial mean fused)."""
    # Conv as one big MXU matmul, f32 accumulation.
    y = jnp.dot(p_ref[...], w_ref[...], preferred_element_type=jnp.float32)
    bias = pb_ref[0:1, :]
    gamma = pb_ref[1:2, :]
    beta = pb_ref[2:3, :]
    y = y + bias                                                   # (R, C) f32

    R = batch * rows_per_batch
    C = y.shape[1]
    cg = C // num_groups
    inv_cnt = 1.0 / float(rows_per_batch * cg)

    # Segment (per-sample) pooling / broadcast matrices built from 2-D iota.
    # Only mul / cmp / select on the VPU (no integer division).
    col_r = jax.lax.broadcasted_iota(jnp.int32, (batch, R), 1)
    row_b = jax.lax.broadcasted_iota(jnp.int32, (batch, R), 0)
    seg_lo = row_b * rows_per_batch
    pool = jnp.where((col_r >= seg_lo) & (col_r < seg_lo + rows_per_batch),
                     1.0, 0.0)                                     # (B, R)
    row_r = jax.lax.broadcasted_iota(jnp.int32, (R, batch), 0)
    col_b = jax.lax.broadcasted_iota(jnp.int32, (R, batch), 1)
    seg_lo2 = col_b * rows_per_batch
    bcast = jnp.where((row_r >= seg_lo2) & (row_r < seg_lo2 + rows_per_batch),
                      1.0, 0.0)                                    # (R, B)

    # GroupNorm (per sample, consecutive-channel groups) -> affine -> ReLU.
    s1 = jnp.dot(pool, y, preferred_element_type=jnp.float32)       # (B, C)
    mean_bc = _group_broadcast_sum(s1, num_groups) * inv_cnt         # (B, C)
    d = y - jnp.dot(bcast, mean_bc, preferred_element_type=jnp.float32)
    s2 = jnp.dot(pool, d * d, preferred_element_type=jnp.float32)    # (B, C)
    inv_bc = jax.lax.rsqrt(
        _group_broadcast_sum(s2, num_groups) * inv_cnt + eps)        # (B, C)
    out = d * jnp.dot(bcast, inv_bc, preferred_element_type=jnp.float32)
    out = jnp.maximum(out * gamma + beta, 0.0)                        # ReLU

    if fuse_mean:
        pooled = jnp.dot(pool, out, preferred_element_type=jnp.float32)
        o_ref[...] = (pooled * (1.0 / float(rows_per_batch))).astype(o_ref.dtype)
    else:
        o_ref[...] = out.astype(o_ref.dtype)


# ----------------------------------------------------------------------------
# JAX glue: TF-"SAME" padding + im2col (bf16), pallas_call wrapper
# ----------------------------------------------------------------------------
def im2col_same(x, k, s):
    """x: (B, H, W, C) -> bf16 patches (B, oh*ow, k*k*C), TF-SAME padding."""
    B, H, W, C = x.shape
    out_h = -(-H // s)
    out_w = -(-W // s)
    pad_h = max((out_h - 1) * s + k - H, 0)
    pad_w = max((out_w - 1) * s + k - W, 0)
    xp = jnp.pad(x.astype(jnp.bfloat16),
                 ((0, 0), (pad_h // 2, pad_h - pad_h // 2),
                  (pad_w // 2, pad_w - pad_w // 2), (0, 0)))
    cols = []
    for di in range(k):
        for dj in range(k):
            cols.append(xp[:, di: di + (out_h - 1) * s + 1: s,
                              dj: dj + (out_w - 1) * s + 1: s, :])
    patches = jnp.stack(cols, axis=3)                     # (B, oh, ow, k*k, C)
    return patches.reshape(B, out_h * out_w, k * k * C), out_h, out_w


def conv_gn_relu_layer(x_nhwc, w_mat, pb, k, s, num_groups, eps, fuse_mean):
    Bt = x_nhwc.shape[0]
    patches, out_h, out_w = im2col_same(x_nhwc, k, s)     # (Bt, N, K) bf16
    N, K = patches.shape[1], patches.shape[2]
    R = Bt * N
    C = w_mat.shape[1]
    patches2d = patches.reshape(R, K)                     # flatten batch rows
    out_rows = Bt if fuse_mean else R
    out_dtype = jnp.float32 if fuse_mean else jnp.bfloat16

    kernel = functools.partial(fused_conv_gn_relu_kernel,
                               num_groups=num_groups, eps=eps,
                               fuse_mean=fuse_mean, batch=Bt,
                               rows_per_batch=N)
    y = pl.pallas_call(
        kernel,
        out_shape=jax.ShapeDtypeStruct((out_rows, C), out_dtype),
        grid=(1,),
        in_specs=[
            pl.BlockSpec((R, K), lambda i: (0, 0)),
            pl.BlockSpec((K, C), lambda i: (0, 0)),
            pl.BlockSpec((3, C), lambda i: (0, 0)),
        ],
        out_specs=pl.BlockSpec((out_rows, C), lambda i: (0, 0)),
        compiler_params=pltpu.CompilerParams(
            dimension_semantics=("arbitrary",)),
    )(patches2d, w_mat, pb)

    if fuse_mean:
        return y                                          # (Bt, C) f32
    return y.reshape(Bt, out_h, out_w, C)                 # bf16 NHWC


# ----------------------------------------------------------------------------
# CMDTop forward (Pallas) and pure-JAX reference
# ----------------------------------------------------------------------------
def cmdtop_forward(x, params, kernel_shapes, strides, eps=1e-5):
    """x: (B, H, W, I, J) -> (B, 2 * out_channels[-1])."""
    B, H, W, I, J = x.shape
    # 'b h w i j -> b (i j) h w' (NCHW)  == NHWC (b, h, w, i*j)
    f1 = x.reshape(B, H, W, I * J)
    # 'b h w i j -> b (h w) i j' (NCHW)  == NHWC (b, i, j, h*w)
    f2 = jnp.transpose(x, (0, 3, 4, 1, 2)).reshape(B, I, J, H * W)

    # Both branches use the SAME conv weights; stack along batch when shapes
    # match so every layer is a single pallas_call over the full 2B batch.
    stacked = f1.shape == f2.shape
    feats = [jnp.concatenate([f1, f2], axis=0)] if stacked else [f1, f2]

    n_layers = len(params)
    pooled = []
    for feat in feats:
        for li, ((w_pt, b, g, be), k, s) in enumerate(
                zip(params, kernel_shapes, strides)):
            cout = w_pt.shape[0]
            num_groups = cout // 16
            # torch weight (Cout, Cin, KH, KW) -> ((KH KW Cin), Cout), bf16 MXU
            w_mat = jnp.transpose(w_pt, (2, 3, 1, 0)).reshape(-1, cout)
            w_mat = w_mat.astype(jnp.bfloat16)
            pb = jnp.concatenate([b, g, be], axis=0)      # (3, Cout) f32
            feat = conv_gn_relu_layer(feat, w_mat, pb, k, s, num_groups, eps,
                                      fuse_mean=(li == n_layers - 1))
        pooled.append(feat)                               # (Bt, C) f32

    if stacked:
        y = pooled[0]                                     # (2B, C)
        m1, m2 = y[:B], y[B:]
    else:
        m1, m2 = pooled[0], pooled[1]
    return jnp.concatenate([m1, m2], axis=-1)


def reference_forward(x, params, kernel_shapes, strides, eps=1e-5):
    """Pure-JAX reference with the same matmul precision as the kernel
    (bf16 conv inputs, f32 accumulation; GroupNorm/affine/ReLU in f32)."""
    B, H, W, I, J = x.shape

    def branch(feat):
        for (w_pt, bias, gamma, beta), k, s in zip(params, kernel_shapes,
                                                   strides):
            w_hwio = jnp.transpose(w_pt, (2, 3, 1, 0)).astype(jnp.bfloat16)
            feat = jax.lax.conv_general_dilated(
                feat.astype(jnp.bfloat16), w_hwio, window_strides=(s, s),
                padding="SAME", dimension_numbers=("NHWC", "HWIO", "NHWC"),
                preferred_element_type=jnp.float32)
            feat = feat + bias.reshape(1, 1, 1, -1)
            b_, h_, w_, C = feat.shape
            G = C // 16
            fg = feat.reshape(b_, h_ * w_, G, C // G)
            mu = jnp.mean(fg, axis=(1, 3), keepdims=True)
            var = jnp.mean((fg - mu) ** 2, axis=(1, 3), keepdims=True)
            fg = (fg - mu) * jax.lax.rsqrt(var + eps)
            feat = fg.reshape(b_, h_, w_, C) * gamma.reshape(1, 1, 1, -1) \
                   + beta.reshape(1, 1, 1, -1)
            feat = jnp.maximum(feat, 0.0)
        return feat

    out1 = branch(x.reshape(B, H, W, I * J))
    out2 = branch(jnp.transpose(x, (0, 3, 4, 1, 2)).reshape(B, I, J, H * W))
    return jnp.concatenate([jnp.mean(out1, axis=(1, 2)),
                            jnp.mean(out2, axis=(1, 2))], axis=-1)


def init_params(key, in_channel, out_channels, kernel_shapes):
    params = []
    cins = [in_channel] + list(out_channels[:-1])
    for cin, cout, k in zip(cins, out_channels, kernel_shapes):
        key, k1, k2, k3, k4 = jax.random.split(key, 5)
        fan_in = cin * k * k
        w = jax.random.normal(k1, (cout, cin, k, k), jnp.float32) / np.sqrt(fan_in)
        b = 0.1 * jax.random.normal(k2, (1, cout), jnp.float32)
        gamma = 1.0 + 0.1 * jax.random.normal(k3, (1, cout), jnp.float32)
        beta = 0.1 * jax.random.normal(k4, (1, cout), jnp.float32)
        params.append((w, b, gamma, beta))
    return params


if __name__ == "__main__":
    key = jax.random.PRNGKey(0)
    # Small shapes consistent with the module: x is (b, h, w, i, j) and the
    # shared conv stack requires h*w == i*j == in_channel.
    B, H, W, I, J = 2, 4, 4, 4, 4
    in_channel = I * J            # = 16 = H * W
    out_channels = (16, 32)       # multiples of 16 (GroupNorm uses C // 16 groups)
    kernel_shapes = (3, 3)
    strides = (2, 2)

    kx, kp = jax.random.split(key)
    x = jax.random.normal(kx, (B, H, W, I, J), jnp.float32)
    params = init_params(kp, in_channel, out_channels, kernel_shapes)

    fwd = jax.jit(functools.partial(cmdtop_forward,
                                    kernel_shapes=kernel_shapes,
                                    strides=strides))
    out = jax.block_until_ready(fwd(x, params))

    ref = reference_forward(x, params, kernel_shapes, strides)
    np.testing.assert_allclose(np.asarray(out), np.asarray(ref),
                               rtol=2e-3, atol=2e-3)
    print("KERNEL_OK")
</pallas_src>

<mosaic_0001>
module attributes {stable_mosaic.version = 11 : i64} {
  func.func @fused_conv_gn_relu_kernel(%arg0: i32, %arg1: memref<16x144xbf16, #tpu.memory_space<vmem>>, %arg2: memref<144x16xbf16, #tpu.memory_space<vmem>>, %arg3: memref<3x16xf32, #tpu.memory_space<vmem>>, %arg4: memref<16x16xbf16, #tpu.memory_space<vmem>>) attributes {dimension_semantics = [#tpu.dimension_semantics<arbitrary>], iteration_bounds = array<i64: 1>, scalar_prefetch = 0 : i64, scratch_operands = 0 : i64, tpu.core_type = #tpu.core_type<tc>, window_params = [{pipeline_mode = #tpu.pipeline_mode<synchronous>, transform_indices = @transform_0, window_bounds = array<i64: 16, 144>}, {pipeline_mode = #tpu.pipeline_mode<synchronous>, transform_indices = @transform_1, window_bounds = array<i64: 144, 16>}, {pipeline_mode = #tpu.pipeline_mode<synchronous>, transform_indices = @transform_2, window_bounds = array<i64: 3, 16>}, {pipeline_mode = #tpu.pipeline_mode<synchronous>, transform_indices = @transform_3, window_bounds = array<i64: 16, 16>}]} {
    %c0 = arith.constant 0 : index
    %c0_0 = arith.constant 0 : index
    %0 = vector.load %arg1[%c0, %c0_0] : memref<16x144xbf16, #tpu.memory_space<vmem>>, vector<16x144xbf16>
    %c0_1 = arith.constant 0 : index
    %c0_2 = arith.constant 0 : index
    %1 = vector.load %arg2[%c0_1, %c0_2] : memref<144x16xbf16, #tpu.memory_space<vmem>>, vector<144x16xbf16>
    %cst = arith.constant dense<0.000000e+00> : vector<16x16xf32>
    %2 = tpu.matmul %0, %1, %cst {dimension_numbers = #tpu.dot_dimension_numbers<[1], [0], [0], [1], [0, 0, 1, 1], [], []>} : vector<16x144xbf16>, vector<144x16xbf16>, vector<16x16xf32> -> vector<16x16xf32>
    %c0_3 = arith.constant 0 : index
    %c0_4 = arith.constant 0 : index
    %3 = vector.load %arg3[%c0_3, %c0_4] : memref<3x16xf32, #tpu.memory_space<vmem>>, vector<1x16xf32>
    %c1 = arith.constant 1 : index
    %c0_5 = arith.constant 0 : index
    %4 = vector.load %arg3[%c1, %c0_5] : memref<3x16xf32, #tpu.memory_space<vmem>>, vector<1x16xf32>
    %c2 = arith.constant 2 : index
    %c0_6 = arith.constant 0 : index
    %5 = vector.load %arg3[%c2, %c0_6] : memref<3x16xf32, #tpu.memory_space<vmem>>, vector<1x16xf32>
    %6 = vector.broadcast %3 : vector<1x16xf32> to vector<16x16xf32>
    %7 = arith.addf %2, %6 : vector<16x16xf32>
    %8 = tpu.iota {dimensions = array<i32: 1>} : vector<4x16xi32>
    %9 = tpu.iota {dimensions = array<i32: 0>} : vector<4x16xi32>
    %c4_i32 = arith.constant 4 : i32
    %10 = vector.broadcast %c4_i32 : i32 to vector<4x16xi32>
    %11 = arith.muli %9, %10 : vector<4x16xi32>
    %12 = arith.cmpi sge, %8, %11 : vector<4x16xi32>
    %c4_i32_7 = arith.constant 4 : i32
    %13 = vector.broadcast %c4_i32_7 : i32 to vector<4x16xi32>
    %14 = arith.addi %11, %13 : vector<4x16xi32>
    %15 = arith.cmpi slt, %8, %14 : vector<4x16xi32>
    %16 = arith.andi %12, %15 : vector<4x16xi1>
    %cst_8 = arith.constant 1.000000e+00 : f32
    %cst_9 = arith.constant 0.000000e+00 : f32
    %17 = vector.broadcast %cst_8 : f32 to vector<4x16xf32>
    %18 = vector.broadcast %cst_9 : f32 to vector<4x16xf32>
    %19 = arith.select %16, %17, %18 : vector<4x16xi1>, vector<4x16xf32>
    %20 = tpu.iota {dimensions = array<i32: 0>} : vector<16x4xi32>
    %21 = tpu.iota {dimensions = array<i32: 1>} : vector<16x4xi32>
    %c4_i32_10 = arith.constant 4 : i32
    %22 = vector.broadcast %c4_i32_10 : i32 to vector<16x4xi32>
    %23 = arith.muli %21, %22 : vector<16x4xi32>
    %24 = arith.cmpi sge, %20, %23 : vector<16x4xi32>
    %c4_i32_11 = arith.constant 4 : i32
    %25 = vector.broadcast %c4_i32_11 : i32 to vector<16x4xi32>
    %26 = arith.addi %23, %25 : vector<16x4xi32>
    %27 = arith.cmpi slt, %20, %26 : vector<16x4xi32>
    %28 = arith.andi %24, %27 : vector<16x4xi1>
    %cst_12 = arith.constant 1.000000e+00 : f32
    %cst_13 = arith.constant 0.000000e+00 : f32
    %29 = vector.broadcast %cst_12 : f32 to vector<16x4xf32>
    %30 = vector.broadcast %cst_13 : f32 to vector<16x4xf32>
    %31 = arith.select %28, %29, %30 : vector<16x4xi1>, vector<16x4xf32>
    %cst_14 = arith.constant dense<0.000000e+00> : vector<4x16xf32>
    %32 = tpu.matmul %19, %7, %cst_14 {dimension_numbers = #tpu.dot_dimension_numbers<[1], [0], [0], [1], [0, 0, 1, 1], [], []>} : vector<4x16xf32>, vector<16x16xf32>, vector<4x16xf32> -> vector<4x16xf32>
    %cst_15 = arith.constant dense<0.000000e+00> : vector<4xf32>
    %33 = vector.multi_reduction <add>, %32, %cst_15 [1] : vector<4x16xf32> to vector<4xf32>
    %34 = vector.shape_cast %33 : vector<4xf32> to vector<4x1xf32>
    %35 = vector.shape_cast %34 : vector<4x1xf32> to vector<4x1xf32>
    %36 = vector.broadcast %35 : vector<4x1xf32> to vector<4x16xf32>
    %cst_16 = arith.constant 1.562500e-02 : f32
    %37 = vector.broadcast %cst_16 : f32 to vector<4x16xf32>
    %38 = arith.mulf %36, %37 : vector<4x16xf32>
    %cst_17 = arith.constant dense<0.000000e+00> : vector<16x16xf32>
    %39 = tpu.matmul %31, %38, %cst_17 {dimension_numbers = #tpu.dot_dimension_numbers<[1], [0], [0], [1], [0, 0, 1, 1], [], []>} : vector<16x4xf32>, vector<4x16xf32>, vector<16x16xf32> -> vector<16x16xf32>
    %40 = arith.subf %7, %39 : vector<16x16xf32>
    %41 = arith.mulf %40, %40 : vector<16x16xf32>
    %cst_18 = arith.constant dense<0.000000e+00> : vector<4x16xf32>
    %42 = tpu.matmul %19, %41, %cst_18 {dimension_numbers = #tpu.dot_dimension_numbers<[1], [0], [0], [1], [0, 0, 1, 1], [], []>} : vector<4x16xf32>, vector<16x16xf32>, vector<4x16xf32> -> vector<4x16xf32>
    %cst_19 = arith.constant dense<0.000000e+00> : vector<4xf32>
    %43 = vector.multi_reduction <add>, %42, %cst_19 [1] : vector<4x16xf32> to vector<4xf32>
    %44 = vector.shape_cast %43 : vector<4xf32> to vector<4x1xf32>
    %45 = vector.shape_cast %44 : vector<4x1xf32> to vector<4x1xf32>
    %46 = vector.broadcast %45 : vector<4x1xf32> to vector<4x16xf32>
    %cst_20 = arith.constant 1.562500e-02 : f32
    %47 = vector.broadcast %cst_20 : f32 to vector<4x16xf32>
    %48 = arith.mulf %46, %47 : vector<4x16xf32>
    %cst_21 = arith.constant 9.99999974E-6 : f32
    %49 = vector.broadcast %cst_21 : f32 to vector<4x16xf32>
    %50 = arith.addf %48, %49 : vector<4x16xf32>
    %51 = math.rsqrt %50 : vector<4x16xf32>
    %cst_22 = arith.constant dense<0.000000e+00> : vector<16x16xf32>
    %52 = tpu.matmul %31, %51, %cst_22 {dimension_numbers = #tpu.dot_dimension_numbers<[1], [0], [0], [1], [0, 0, 1, 1], [], []>} : vector<16x4xf32>, vector<4x16xf32>, vector<16x16xf32> -> vector<16x16xf32>
    %53 = arith.mulf %40, %52 : vector<16x16xf32>
    %54 = vector.broadcast %4 : vector<1x16xf32> to vector<16x16xf32>
    %55 = arith.mulf %53, %54 : vector<16x16xf32>
    %56 = vector.broadcast %5 : vector<1x16xf32> to vector<16x16xf32>
    %57 = arith.addf %55, %56 : vector<16x16xf32>
    %cst_23 = arith.constant 0.000000e+00 : f32
    %58 = vector.broadcast %cst_23 : f32 to vector<16x16xf32>
    %59 = arith.maximumf %57, %58 : vector<16x16xf32>
    %60 = arith.truncf %59 : vector<16x16xf32> to vector<16x16xbf16>
    %c0_24 = arith.constant 0 : index
    %c0_25 = arith.constant 0 : index
    %61 = vector.load %arg4[%c0_24, %c0_25] : memref<16x16xbf16, #tpu.memory_space<vmem>>, vector<16x16xbf16>
    tpu.vector_store %arg4[%c0_24, %c0_25], %60 {strides = array<i32>} : memref<16x16xbf16, #tpu.memory_space<vmem>>, vector<16x16xbf16>,
    return
  }
  func.func @transform_0(%arg0: i32) -> (i32, i32) {
    %c0_i32 = arith.constant 0 : i32
    %c0_i32_0 = arith.constant 0 : i32
    %c0_i32_1 = arith.constant 0 : i32
    return %c0_i32, %c0_i32_0 : i32, i32
  }
  func.func @transform_1(%arg0: i32) -> (i32, i32) {
    %c0_i32 = arith.constant 0 : i32
    %c0_i32_0 = arith.constant 0 : i32
    %c0_i32_1 = arith.constant 0 : i32
    return %c0_i32, %c0_i32_0 : i32, i32
  }
  func.func @transform_2(%arg0: i32) -> (i32, i32) {
    %c0_i32 = arith.constant 0 : i32
    %c0_i32_0 = arith.constant 0 : i32
    %c0_i32_1 = arith.constant 0 : i32
    return %c0_i32, %c0_i32_0 : i32, i32
  }
  func.func @transform_3(%arg0: i32) -> (i32, i32) {
    %c0_i32 = arith.constant 0 : i32
    %c0_i32_0 = arith.constant 0 : i32
    %c0_i32_1 = arith.constant 0 : i32
    return %c0_i32, %c0_i32_0 : i32, i32
  }
}

module attributes {stable_mosaic.version = 11 : i64} {
  func.func @fused_conv_gn_relu_kernel(%arg0: i32, %arg1: memref<4x144xbf16, #tpu.memory_space<vmem>>, %arg2: memref<144x32xbf16, #tpu.memory_space<vmem>>, %arg3: memref<3x32xf32, #tpu.memory_space<vmem>>, %arg4: memref<4x32xf32, #tpu.memory_space<vmem>>) attributes {dimension_semantics = [#tpu.dimension_semantics<arbitrary>], iteration_bounds = array<i64: 1>, scalar_prefetch = 0 : i64, scratch_operands = 0 : i64, tpu.core_type = #tpu.core_type<tc>, window_params = [{pipeline_mode = #tpu.pipeline_mode<synchronous>, transform_indices = @transform_0, window_bounds = array<i64: 4, 144>}, {pipeline_mode = #tpu.pipeline_mode<synchronous>, transform_indices = @transform_1, window_bounds = array<i64: 144, 32>}, {pipeline_mode = #tpu.pipeline_mode<synchronous>, transform_indices = @transform_2, window_bounds = array<i64: 3, 32>}, {pipeline_mode = #tpu.pipeline_mode<synchronous>, transform_indices = @transform_3, window_bounds = array<i64: 4, 32>}]} {
    %c0 = arith.constant 0 : index
    %c0_0 = arith.constant 0 : index
    %0 = vector.load %arg1[%c0, %c0_0] : memref<4x144xbf16, #tpu.memory_space<vmem>>, vector<4x144xbf16>
    %c0_1 = arith.constant 0 : index
    %c0_2 = arith.constant 0 : index
    %1 = vector.load %arg2[%c0_1, %c0_2] : memref<144x32xbf16, #tpu.memory_space<vmem>>, vector<144x32xbf16>
    %cst = arith.constant dense<0.000000e+00> : vector<4x32xf32>
    %2 = tpu.matmul %0, %1, %cst {dimension_numbers = #tpu.dot_dimension_numbers<[1], [0], [0], [1], [0, 0, 1, 1], [], []>} : vector<4x144xbf16>, vector<144x32xbf16>, vector<4x32xf32> -> vector<4x32xf32>
    %c0_3 = arith.constant 0 : index
    %c0_4 = arith.constant 0 : index
    %3 = vector.load %arg3[%c0_3, %c0_4] : memref<3x32xf32, #tpu.memory_space<vmem>>, vector<1x32xf32>
    %c1 = arith.constant 1 : index
    %c0_5 = arith.constant 0 : index
    %4 = vector.load %arg3[%c1, %c0_5] : memref<3x32xf32, #tpu.memory_space<vmem>>, vector<1x32xf32>
    %c2 = arith.constant 2 : index
    %c0_6 = arith.constant 0 : index
    %5 = vector.load %arg3[%c2, %c0_6] : memref<3x32xf32, #tpu.memory_space<vmem>>, vector<1x32xf32>
    %6 = vector.broadcast %3 : vector<1x32xf32> to vector<4x32xf32>
    %7 = arith.addf %2, %6 : vector<4x32xf32>
    %8 = tpu.iota {dimensions = array<i32: 1>} : vector<4x4xi32>
    %9 = tpu.iota {dimensions = array<i32: 0>} : vector<4x4xi32>
    %c1_i32 = arith.constant 1 : i32
    %10 = vector.broadcast %c1_i32 : i32 to vector<4x4xi32>
    %11 = arith.muli %9, %10 : vector<4x4xi32>
    %12 = arith.cmpi sge, %8, %11 : vector<4x4xi32>
    %c1_i32_7 = arith.constant 1 : i32
    %13 = vector.broadcast %c1_i32_7 : i32 to vector<4x4xi32>
    %14 = arith.addi %11, %13 : vector<4x4xi32>
    %15 = arith.cmpi slt, %8, %14 : vector<4x4xi32>
    %16 = arith.andi %12, %15 : vector<4x4xi1>
    %cst_8 = arith.constant 1.000000e+00 : f32
    %cst_9 = arith.constant 0.000000e+00 : f32
    %17 = vector.broadcast %cst_8 : f32 to vector<4x4xf32>
    %18 = vector.broadcast %cst_9 : f32 to vector<4x4xf32>
    %19 = arith.select %16, %17, %18 : vector<4x4xi1>, vector<4x4xf32>
    %20 = tpu.iota {dimensions = array<i32: 0>} : vector<4x4xi32>
    %21 = tpu.iota {dimensions = array<i32: 1>} : vector<4x4xi32>
    %c1_i32_10 = arith.constant 1 : i32
    %22 = vector.broadcast %c1_i32_10 : i32 to vector<4x4xi32>
    %23 = arith.muli %21, %22 : vector<4x4xi32>
    %24 = arith.cmpi sge, %20, %23 : vector<4x4xi32>
    %c1_i32_11 = arith.constant 1 : i32
    %25 = vector.broadcast %c1_i32_11 : i32 to vector<4x4xi32>
    %26 = arith.addi %23, %25 : vector<4x4xi32>
    %27 = arith.cmpi slt, %20, %26 : vector<4x4xi32>
    %28 = arith.andi %24, %27 : vector<4x4xi1>
    %cst_12 = arith.constant 1.000000e+00 : f32
    %cst_13 = arith.constant 0.000000e+00 : f32
    %29 = vector.broadcast %cst_12 : f32 to vector<4x4xf32>
    %30 = vector.broadcast %cst_13 : f32 to vector<4x4xf32>
    %31 = arith.select %28, %29, %30 : vector<4x4xi1>, vector<4x4xf32>
    %cst_14 = arith.constant dense<0.000000e+00> : vector<4x32xf32>
    %32 = tpu.matmul %19, %7, %cst_14 {dimension_numbers = #tpu.dot_dimension_numbers<[1], [0], [0], [1], [0, 0, 1, 1], [], []>} : vector<4x4xf32>, vector<4x32xf32>, vector<4x32xf32> -> vector<4x32xf32>
    %33 = vector.extract_strided_slice %32 {offsets = [0, 0], sizes = [4, 16], strides = [1, 1]} : vector<4x32xf32> to vector<4x16xf32>
    %cst_15 = arith.constant dense<0.000000e+00> : vector<4xf32>
    %34 = vector.multi_reduction <add>, %33, %cst_15 [1] : vector<4x16xf32> to vector<4xf32>
    %35 = vector.shape_cast %34 : vector<4xf32> to vector<4x1xf32>
    %36 = vector.shape_cast %35 : vector<4x1xf32> to vector<4x1xf32>
    %37 = vector.broadcast %36 : vector<4x1xf32> to vector<4x16xf32>
    %38 = vector.extract_strided_slice %32 {offsets = [0, 16], sizes = [4, 16], strides = [1, 1]} : vector<4x32xf32> to vector<4x16xf32>
    %cst_16 = arith.constant dense<0.000000e+00> : vector<4xf32>
    %39 = vector.multi_reduction <add>, %38, %cst_16 [1] : vector<4x16xf32> to vector<4xf32>
    %40 = vector.shape_cast %39 : vector<4xf32> to vector<4x1xf32>
    %41 = vector.shape_cast %40 : vector<4x1xf32> to vector<4x1xf32>
    %42 = vector.broadcast %41 : vector<4x1xf32> to vector<4x16xf32>
    %43 = tpu.concatenate %37, %42 in 1 : vector<4x16xf32>, vector<4x16xf32> -> vector<4x32xf32>
    %cst_17 = arith.constant 6.250000e-02 : f32
    %44 = vector.broadcast %cst_17 : f32 to vector<4x32xf32>
    %45 = arith.mulf %43, %44 : vector<4x32xf32>
    %cst_18 = arith.constant dense<0.000000e+00> : vector<4x32xf32>
    %46 = tpu.matmul %31, %45, %cst_18 {dimension_numbers = #tpu.dot_dimension_numbers<[1], [0], [0], [1], [0, 0, 1, 1], [], []>} : vector<4x4xf32>, vector<4x32xf32>, vector<4x32xf32> -> vector<4x32xf32>
    %47 = arith.subf %7, %46 : vector<4x32xf32>
    %48 = arith.mulf %47, %47 : vector<4x32xf32>
    %cst_19 = arith.constant dense<0.000000e+00> : vector<4x32xf32>
    %49 = tpu.matmul %19, %48, %cst_19 {dimension_numbers = #tpu.dot_dimension_numbers<[1], [0], [0], [1], [0, 0, 1, 1], [], []>} : vector<4x4xf32>, vector<4x32xf32>, vector<4x32xf32> -> vector<4x32xf32>
    %50 = vector.extract_strided_slice %49 {offsets = [0, 0], sizes = [4, 16], strides = [1, 1]} : vector<4x32xf32> to vector<4x16xf32>
    %cst_20 = arith.constant dense<0.000000e+00> : vector<4xf32>
    %51 = vector.multi_reduction <add>, %50, %cst_20 [1] : vector<4x16xf32> to vector<4xf32>
    %52 = vector.shape_cast %51 : vector<4xf32> to vector<4x1xf32>
    %53 = vector.shape_cast %52 : vector<4x1xf32> to vector<4x1xf32>
    %54 = vector.broadcast %53 : vector<4x1xf32> to vector<4x16xf32>
    %55 = vector.extract_strided_slice %49 {offsets = [0, 16], sizes = [4, 16], strides = [1, 1]} : vector<4x32xf32> to vector<4x16xf32>
    %cst_21 = arith.constant dense<0.000000e+00> : vector<4xf32>
    %56 = vector.multi_reduction <add>, %55, %cst_21 [1] : vector<4x16xf32> to vector<4xf32>
    %57 = vector.shape_cast %56 : vector<4xf32> to vector<4x1xf32>
    %58 = vector.shape_cast %57 : vector<4x1xf32> to vector<4x1xf32>
    %59 = vector.broadcast %58 : vector<4x1xf32> to vector<4x16xf32>
    %60 = tpu.concatenate %54, %59 in 1 : vector<4x16xf32>, vector<4x16xf32> -> vector<4x32xf32>
    %cst_22 = arith.constant 6.250000e-02 : f32
    %61 = vector.broadcast %cst_22 : f32 to vector<4x32xf32>
    %62 = arith.mulf %60, %61 : vector<4x32xf32>
    %cst_23 = arith.constant 9.99999974E-6 : f32
    %63 = vector.broadcast %cst_23 : f32 to vector<4x32xf32>
    %64 = arith.addf %62, %63 : vector<4x32xf32>
    %65 = math.rsqrt %64 : vector<4x32xf32>
    %cst_24 = arith.constant dense<0.000000e+00> : vector<4x32xf32>
    %66 = tpu.matmul %31, %65, %cst_24 {dimension_numbers = #tpu.dot_dimension_numbers<[1], [0], [0], [1], [0, 0, 1, 1], [], []>} : vector<4x4xf32>, vector<4x32xf32>, vector<4x32xf32> -> vector<4x32xf32>
    %67 = arith.mulf %47, %66 : vector<4x32xf32>
    %68 = vector.broadcast %4 : vector<1x32xf32> to vector<4x32xf32>
    %69 = arith.mulf %67, %68 : vector<4x32xf32>
    %70 = vector.broadcast %5 : vector<1x32xf32> to vector<4x32xf32>
    %71 = arith.addf %69, %70 : vector<4x32xf32>
    %cst_25 = arith.constant 0.000000e+00 : f32
    %72 = vector.broadcast %cst_25 : f32 to vector<4x32xf32>
    %73 = arith.maximumf %71, %72 : vector<4x32xf32>
    %cst_26 = arith.constant dense<0.000000e+00> : vector<4x32xf32>
    %74 = tpu.matmul %19, %73, %cst_26 {dimension_numbers = #tpu.dot_dimension_numbers<[1], [0], [0], [1], [0, 0, 1, 1], [], []>} : vector<4x4xf32>, vector<4x32xf32>, vector<4x32xf32> -> vector<4x32xf32>
    %cst_27 = arith.constant 1.000000e+00 : f32
    %75 = vector.broadcast %cst_27 : f32 to vector<4x32xf32>
    %76 = arith.mulf %74, %75 : vector<4x32xf32>
    %c0_28 = arith.constant 0 : index
    %c0_29 = arith.constant 0 : index
    %77 = vector.load %arg4[%c0_28, %c0_29] : memref<4x32xf32, #tpu.memory_space<vmem>>, vector<4x32xf32>
    tpu.vector_store %arg4[%c0_28, %c0_29], %76 {strides = array<i32>} : memref<4x32xf32, #tpu.memory_space<vmem>>, vector<4x32xf32>,
    return
  }
  func.func @transform_0(%arg0: i32) -> (i32, i32) {
    %c0_i32 = arith.constant 0 : i32
    %c0_i32_0 = arith.constant 0 : i32
    %c0_i32_1 = arith.constant 0 : i32
    return %c0_i32, %c0_i32_0 : i32, i32
  }
  func.func @transform_1(%arg0: i32) -> (i32, i32) {
    %c0_i32 = arith.constant 0 : i32
    %c0_i32_0 = arith.constant 0 : i32
    %c0_i32_1 = arith.constant 0 : i32
    return %c0_i32, %c0_i32_0 : i32, i32
  }
  func.func @transform_2(%arg0: i32) -> (i32, i32) {
    %c0_i32 = arith.constant 0 : i32
    %c0_i32_0 = arith.constant 0 : i32
    %c0_i32_1 = arith.constant 0 : i32
    return %c0_i32, %c0_i32_0 : i32, i32
  }
  func.func @transform_3(%arg0: i32) -> (i32, i32) {
    %c0_i32 = arith.constant 0 : i32
    %c0_i32_0 = arith.constant 0 : i32
    %c0_i32_1 = arith.constant 0 : i32
    return %c0_i32, %c0_i32_0 : i32, i32
  }
}

</mosaic_0001>

<llo_original>
// kernel: cmdtop_forward.3
$region0: #{cmdtop_forward.3}
  #allocation0 [shape = 'u32[]', space=smem, size = 0x4, offset = 0x4, fixed_abs, tag = 'smem constant byte address 0x4 - core index']
  #allocation1 [shape = 'u32[144,128]{1,0:T(1,128)}', space=vmem, size = 0x12000, scoped, tag = 'internal scratch']
  %s0 = inlined_call_operand.vmem [shape: bf16[4,144], index: 0, kind: input, shape index: {}]
  %s1 = inlined_call_operand.vmem [shape: bf16[144,32], index: 1, kind: input, shape index: {}]
  %s2 = inlined_call_operand.vmem [shape: f32[3,32], index: 2, kind: input, shape index: {}]
  %s3 = inlined_call_operand.vmem [shape: f32[4,32], index: 3, kind: output, shape index: {}]
  %s4 = sld [smem:[#allocation0]]
  $region22: #{cmdtop_forward.3} parent=0
    _
  %s6 = ssub.s32 1, %s4
  %s7 = scalar_select 0, %s6, %s4
  // Predicated region
  $region2: #{cmdtop_forward.3} parent=0 // pred_check
    _
  $region3: #{cmdtop_forward.3} parent=0 // pred_check_branch
    %9 = sbr.rel (0) target = $region5
  $region4: #{cmdtop_forward.3} parent=0 // pred_region
    _
  $region5: #{cmdtop_forward.3} parent=0 // pred_fallthru
    _
  // Predicated region
  $region6: #{cmdtop_forward.3} parent=0 // pred_check
    _
  $region7: #{cmdtop_forward.3} parent=0 // pred_check_branch
    %11 = sbr.rel (0) target = $region9
  $region8: #{cmdtop_forward.3} parent=0 // pred_region
    _
  $region9: #{cmdtop_forward.3} parent=0 // pred_fallthru
    _
  // Predicated region
  $region10: #{cmdtop_forward.3} parent=0 // pred_check
    _
  $region11: #{cmdtop_forward.3} parent=0 // pred_check_branch
    %13 = sbr.rel (0) target = $region13
  $region12: #{cmdtop_forward.3} parent=0 // pred_region
    _
  $region13: #{cmdtop_forward.3} parent=0 // pred_fallthru
    _
  %v15 = vld [vmem:[%s0] sm:$0xf]
  %v16 = vld [vmem:[%s1] sm:$0xf]
  %v17 = vld [vmem:[%s1 + $0x4] sm:$0xf]
  %v18 = vld [vmem:[%s1 + $0x8] sm:$0xf]
  %v19 = vld [vmem:[%s1 + $0xc] sm:$0xf]
  %v20 = vld [vmem:[%s1 + $0x10] sm:$0xf]
  %v21 = vld [vmem:[%s1 + $0x14] sm:$0xf]
  %v22 = vld [vmem:[%s1 + $0x18] sm:$0xf]
  %v23 = vld [vmem:[%s1 + $0x1c] sm:$0xf]
  %v24 = vld [vmem:[%s1 + $0x20] sm:$0xf]
  %v25 = vld [vmem:[%s1 + $0x24] sm:$0xf]
  %v26 = vld [vmem:[%s1 + $0x28] sm:$0xf]
  %v27 = vld [vmem:[%s1 + $0x2c] sm:$0xf]
  %v28 = vld [vmem:[%s1 + $0x30] sm:$0xf]
  %v29 = vld [vmem:[%s1 + $0x34] sm:$0xf]
  %v30 = vld [vmem:[%s1 + $0x38] sm:$0xf]
  %v31 = vld [vmem:[%s1 + $0x3c] sm:$0xf]
  %v32 = vld [vmem:[%s1 + $0x40] sm:$0xf]
  %v33 = vld [vmem:[%s1 + $0x44] sm:$0xf]
  %v34 = vld [vmem:[%s2] sm:$0x1]
  %v35 = vld [vmem:[%s2 + $0x1] sm:$0x1]
  %v36 = vld [vmem:[%s2 + $0x2] sm:$0x1]
  %v37 = vlaneseq
  %v38 = vshrl.u32 %v37, 7
  %v39 = vsub.s32 0, %v38
  %v40 = vrot.slane %v34, %v39
  %v43 = vunpack.c.l.s4 1983009808
  %v44 = vunpack.c.0.s8 %v43
  %v45 = vlaneseq
  %v46 = vshrl.u32 %v45, 7
  %v47 = vsub.s32 %v44, %v46
  %v48 = vrot.slane %v15, %v47
  %v49 = vcombine.high %v48, %v48
  %v69 = vunpack.c.l.b16 %v16
  %v70 = vunpack.c.l.b16 %v17
  %v71 = vunpack.c.l.b16 %v18
  %v72 = vunpack.c.l.b16 %v19
  %v73 = vunpack.c.l.b16 %v20
  %v74 = vunpack.c.l.b16 %v21
  %v75 = vunpack.c.l.b16 %v22
  %v76 = vunpack.c.l.b16 %v23
  %v77 = vunpack.c.l.b16 %v24
  %v78 = vunpack.c.l.b16 %v25
  %v79 = vunpack.c.l.b16 %v26
  %v80 = vunpack.c.l.b16 %v27
  %v81 = vunpack.c.l.b16 %v28
  %v82 = vunpack.c.l.b16 %v29
  %v83 = vunpack.c.l.b16 %v30
  %v84 = vunpack.c.l.b16 %v31
  %v85 = vunpack.c.l.b16 %v32
  %v86 = vunpack.c.l.b16 %v33
  %v87 = vpack.c.b16 %v70, %v69
  %v88 = vpack.c.b16 %v72, %v71
  %v89 = vpack.c.b16 %v74, %v73
  %v90 = vpack.c.b16 %v76, %v75
  %v91 = vpack.c.b16 %v78, %v77
  %v92 = vpack.c.b16 %v80, %v79
  %v93 = vpack.c.b16 %v82, %v81
  %v94 = vpack.c.b16 %v84, %v83
  %v95 = vpack.c.b16 %v86, %v85
  %vm105 = vcmask 130048
  %v107 = vsel %vm105, %v49, 0
  %109 = vmatprep.subr.bf16.mxu0 0
  %110 = vmatpush1.bf16.msra.mxu0 %v94
  %111 = vmatprep.subr.bf16.mxu0 0
  %112 = vmatpush1.bf16.msra.mxu0 %v93
  %113 = vmatprep.subr.bf16.mxu0 0
  %114 = vmatpush1.bf16.msra.mxu0 %v92
  %115 = vmatprep.subr.bf16.mxu0 0
  %116 = vmatpush1.bf16.msra.mxu0 %v91
  %117 = vmatprep.subr.bf16.mxu0 0
  %118 = vmatpush1.bf16.msra.mxu0 %v90
  %119 = vmatprep.subr.bf16.mxu0 0
  %120 = vmatpush1.bf16.msra.mxu0 %v89
  %121 = vmatprep.subr.bf16.mxu0 0
  %122 = vmatpush1.bf16.msra.mxu0 %v88
  %123 = vmatprep.subr.bf16.mxu0 0
  %124 = vmatpush1.bf16.msra.mxu0 %v87
  %125 = vmatprep.subr.bf16.mxu0 0
  %126 = vmatpush2.bf16.msra.mxu0 0
  %127 = vmatprep.subr.bf16.mxu0 0
  %128 = vmatpush2.bf16.msra.mxu0 0
  %129 = vmatprep.subr.bf16.mxu0 0
  %130 = vmatpush2.bf16.msra.mxu0 0
  %131 = vmatprep.subr.bf16.mxu0 0
  %132 = vmatpush2.bf16.msra.mxu0 0
  %133 = vmatprep.subr.bf16.mxu0 0
  %134 = vmatpush2.bf16.msra.mxu0 0
  %135 = vmatprep.subr.bf16.mxu0 0
  %136 = vmatpush2.bf16.msra.mxu0 0
  %137 = vmatprep.subr.bf16.mxu0 0
  %138 = vmatpush2.bf16.msra.mxu0 0
  %139 = vmatprep.subr.bf16.mxu0 0
  %140 = vmatpush2.bf16.msra.mxu0 %v95
  %141 = vmatprep.mubr.bf16.mxu0 %v107
  %142 = vmatmul.mubr.bf16.gmra.mxu0 %v48
  %v143 = vpop.f32.mrf.mxu0
  %v144 = vadd.f32 %v40, %v143
  %v145 = vpop.f32.mrf.mxu0
  %v146 = vpop.f32.mrf.mxu0
  %v147 = vpop.f32.mrf.mxu0
  %148 = vdwg.mxu0
  %v149 = vlaneseq
  %v150 = vand.u32 %v149, 127
  %v151 = vlaneseq
  %v152 = vshrl.u32 %v151, 7
  %vm153 = vcmp.ge.s32.totalorder %v150, %v152
  %v154 = vadd.s32 %v152, 1
  %vm155 = vcmp.lt.s32.totalorder %v150, %v154
  %vm156 = vmand %vm153, %vm155
  %v157 = vsel %vm156, 1.0, 0.0
  %vm158 = vcmp.ge.s32.totalorder %v152, %v150
  %v159 = vadd.s32 %v150, 1
  %vm160 = vcmp.lt.s32.totalorder %v152, %v159
  %vm161 = vmand %vm158, %vm160
  %v162 = vsel %vm161, 1.0, 0.0
  %vm163 = vcmask 31744
  %v165 = vsel %vm163, %v157, 0
  %vm167 = vcmask 1043456
  %v169 = vsel %vm167, %v144, 0
  %171 = vmatprep.subr.mxu0 0.0
  %172 = vmatpush1.msra.mxu0 0.0
  %173 = vmatprep.subr.mxu0 0.0
  %174 = vmatpush1.msra.mxu0 0.0
  %175 = vmatprep.subr.mxu0 0.0
  %176 = vmatpush1.msra.mxu0 0.0
  %177 = vmatprep.subr.mxu0 0.0
  %178 = vmatpush1.msra.mxu0 0.0
  %179 = vmatprep.subr.mxu0 0.0
  %180 = vmatpush1.msra.mxu0 0.0
  %181 = vmatprep.subr.mxu0 0.0
  %182 = vmatpush1.msra.mxu0 0.0
  %183 = vmatprep.subr.mxu0 0.0
  %184 = vmatpush1.msra.mxu0 0.0
  %185 = vmatprep.subr.mxu0 0.0
  %186 = vmatpush1.msra.mxu0 0.0
  %187 = vmatprep.subr.mxu0 0.0
  %188 = vmatpush1.msra.mxu0 0.0
  %189 = vmatprep.subr.mxu0 0.0
  %190 = vmatpush1.msra.mxu0 0.0
  %191 = vmatprep.subr.mxu0 0.0
  %192 = vmatpush1.msra.mxu0 0.0
  %193 = vmatprep.subr.mxu0 0.0
  %194 = vmatpush1.msra.mxu0 0.0
  %195 = vmatprep.subr.mxu0 0.0
  %196 = vmatpush1.msra.mxu0 0.0
  %197 = vmatprep.subr.mxu0 0.0
  %198 = vmatpush1.msra.mxu0 0.0
  %199 = vmatprep.subr.mxu0 0.0
  %200 = vmatpush1.msra.mxu0 0.0
  %201 = vmatprep.subr.mxu0 0.0
  %202 = vmatpush1.msra.mxu0 %v169
  %203 = vmatprep.subr.mxu0 0.0
  %204 = vmatpush2.msra.mxu0 0.0
  %205 = vmatprep.subr.mxu0 0.0
  %206 = vmatpush2.msra.mxu0 0.0
  %207 = vmatprep.subr.mxu0 0.0
  %208 = vmatpush2.msra.mxu0 0.0
  %209 = vmatprep.subr.mxu0 0.0
  %210 = vmatpush2.msra.mxu0 0.0
  %211 = vmatprep.subr.mxu0 0.0
  %212 = vmatpush2.msra.mxu0 0.0
  %213 = vmatprep.subr.mxu0 0.0
  %214 = vmatpush2.msra.mxu0 0.0
  %215 = vmatprep.subr.mxu0 0.0
  %216 = vmatpush2.msra.mxu0 0.0
  %217 = vmatprep.subr.mxu0 0.0
  %218 = vmatpush2.msra.mxu0 0.0
  %219 = vmatprep.subr.mxu0 0.0
  %220 = vmatpush2.msra.mxu0 0.0
  %221 = vmatprep.subr.mxu0 0.0
  %222 = vmatpush2.msra.mxu0 0.0
  %223 = vmatprep.subr.mxu0 0.0
  %224 = vmatpush2.msra.mxu0 0.0
  %225 = vmatprep.subr.mxu0 0.0
  %226 = vmatpush2.msra.mxu0 0.0
  %227 = vmatprep.subr.mxu0 0.0
  %228 = vmatpush2.msra.mxu0 0.0
  %229 = vmatprep.subr.mxu0 0.0
  %230 = vmatpush2.msra.mxu0 0.0
  %231 = vmatprep.subr.mxu0 0.0
  %232 = vmatpush2.msra.mxu0 0.0
  %233 = vmatprep.subr.mxu0 0.0
  %234 = vmatpush2.msra.mxu0 0.0
  %235 = vmatprep.mubr.f32.mxu0 0.0
  %236 = vmatmul.mubr.f32.gmra.mxu0 %v165
  %v237 = vpop.f32.mrf.mxu0
  %v238 = vadd.f32 0.0, %v237
  %v239 = vpop.f32.mrf.mxu0
  %240 = vdwg.mxu0
  %vm241 = vcmask 125952
  %v242 = vsel %vm241, %v238, 0.0
  %243 = vadd.xlane.f32.xlu0 %v242
  %v244 = vpop.xlane.xlu0 %243
  %246 = vrot.lane.b32.xlu0 %v238, 112
  %v247 = vpop.permute.xlu0 %246
  %v249 = vsel %vm241, %v247, 0.0
  %250 = vadd.xlane.f32.xlu0 %v249
  %v251 = vpop.xlane.xlu0 %250
  %v252 = vsel %vm105, %v244, %v251
  %v253 = vmul.f32 %v252, 0.0625
  %v255 = vsel %vm163, %v162, 0
  %v258 = vsel %vm167, %v253, 0
  %260 = vmatprep.subr.mxu0 0.0
  %261 = vmatpush1.msra.mxu0 0.0
  %262 = vmatprep.subr.mxu0 0.0
  %263 = vmatpush1.msra.mxu0 0.0
  %264 = vmatprep.subr.mxu0 0.0
  %265 = vmatpush1.msra.mxu0 0.0
  %266 = vmatprep.subr.mxu0 0.0
  %267 = vmatpush1.msra.mxu0 0.0
  %268 = vmatprep.subr.mxu0 0.0
  %269 = vmatpush1.msra.mxu0 0.0
  %270 = vmatprep.subr.mxu0 0.0
  %271 = vmatpush1.msra.mxu0 0.0
  %272 = vmatprep.subr.mxu0 0.0
  %273 = vmatpush1.msra.mxu0 0.0
  %274 = vmatprep.subr.mxu0 0.0
  %275 = vmatpush1.msra.mxu0 0.0
  %276 = vmatprep.subr.mxu0 0.0
  %277 = vmatpush1.msra.mxu0 0.0
  %278 = vmatprep.subr.mxu0 0.0
  %279 = vmatpush1.msra.mxu0 0.0
  %280 = vmatprep.subr.mxu0 0.0
  %281 = vmatpush1.msra.mxu0 0.0
  %282 = vmatprep.subr.mxu0 0.0
  %283 = vmatpush1.msra.mxu0 0.0
  %284 = vmatprep.subr.mxu0 0.0
  %285 = vmatpush1.msra.mxu0 0.0
  %286 = vmatprep.subr.mxu0 0.0
  %287 = vmatpush1.msra.mxu0 0.0
  %288 = vmatprep.subr.mxu0 0.0
  %289 = vmatpush1.msra.mxu0 0.0
  %290 = vmatprep.subr.mxu0 0.0
  %291 = vmatpush1.msra.mxu0 %v258
  %292 = vmatprep.subr.mxu0 0.0
  %293 = vmatpush2.msra.mxu0 0.0
  %294 = vmatprep.subr.mxu0 0.0
  %295 = vmatpush2.msra.mxu0 0.0
  %296 = vmatprep.subr.mxu0 0.0
  %297 = vmatpush2.msra.mxu0 0.0
  %298 = vmatprep.subr.mxu0 0.0
  %299 = vmatpush2.msra.mxu0 0.0
  %300 = vmatprep.subr.mxu0 0.0
  %301 = vmatpush2.msra.mxu0 0.0
  %302 = vmatprep.subr.mxu0 0.0
  %303 = vmatpush2.msra.mxu0 0.0
  %304 = vmatprep.subr.mxu0 0.0
  %305 = vmatpush2.msra.mxu0 0.0
  %306 = vmatprep.subr.mxu0 0.0
  %307 = vmatpush2.msra.mxu0 0.0
  %308 = vmatprep.subr.mxu0 0.0
  %309 = vmatpush2.msra.mxu0 0.0
  %310 = vmatprep.subr.mxu0 0.0
  %311 = vmatpush2.msra.mxu0 0.0
  %312 = vmatprep.subr.mxu0 0.0
  %313 = vmatpush2.msra.mxu0 0.0
  %314 = vmatprep.subr.mxu0 0.0
  %315 = vmatpush2.msra.mxu0 0.0
  %316 = vmatprep.subr.mxu0 0.0
  %317 = vmatpush2.msra.mxu0 0.0
  %318 = vmatprep.subr.mxu0 0.0
  %319 = vmatpush2.msra.mxu0 0.0
  %320 = vmatprep.subr.mxu0 0.0
  %321 = vmatpush2.msra.mxu0 0.0
  %322 = vmatprep.subr.mxu0 0.0
  %323 = vmatpush2.msra.mxu0 0.0
  %324 = vmatprep.mubr.f32.mxu0 0.0
  %325 = vmatmul.mubr.f32.gmra.mxu0 %v255
  %v326 = vpop.f32.mrf.mxu0
  %v327 = vadd.f32 0.0, %v326
  %v328 = vpop.f32.mrf.mxu0
  %329 = vdwg.mxu0
  %v330 = vsub.f32 %v144, %v327
  %v331 = vmul.f32 %v330, %v330
  %v333 = vsel %vm167, %v331, 0
  %335 = vmatprep.subr.mxu0 0.0
  %336 = vmatpush1.msra.mxu0 0.0
  %337 = vmatprep.subr.mxu0 0.0
  %338 = vmatpush1.msra.mxu0 0.0
  %339 = vmatprep.subr.mxu0 0.0
  %340 = vmatpush1.msra.mxu0 0.0
  %341 = vmatprep.subr.mxu0 0.0
  %342 = vmatpush1.msra.mxu0 0.0
  %343 = vmatprep.subr.mxu0 0.0
  %344 = vmatpush1.msra.mxu0 0.0
  %345 = vmatprep.subr.mxu0 0.0
  %346 = vmatpush1.msra.mxu0 0.0
  %347 = vmatprep.subr.mxu0 0.0
  %348 = vmatpush1.msra.mxu0 0.0
  %349 = vmatprep.subr.mxu0 0.0
  %350 = vmatpush1.msra.mxu0 0.0
  %351 = vmatprep.subr.mxu0 0.0
  %352 = vmatpush1.msra.mxu0 0.0
  %353 = vmatprep.subr.mxu0 0.0
  %354 = vmatpush1.msra.mxu0 0.0
  %355 = vmatprep.subr.mxu0 0.0
  %356 = vmatpush1.msra.mxu0 0.0
  %357 = vmatprep.subr.mxu0 0.0
  %358 = vmatpush1.msra.mxu0 0.0
  %359 = vmatprep.subr.mxu0 0.0
  %360 = vmatpush1.msra.mxu0 0.0
  %361 = vmatprep.subr.mxu0 0.0
  %362 = vmatpush1.msra.mxu0 0.0
  %363 = vmatprep.subr.mxu0 0.0
  %364 = vmatpush1.msra.mxu0 0.0
  %365 = vmatprep.subr.mxu0 0.0
  %366 = vmatpush1.msra.mxu0 %v333
  %367 = vmatprep.subr.mxu0 0.0
  %368 = vmatpush2.msra.mxu0 0.0
  %369 = vmatprep.subr.mxu0 0.0
  %370 = vmatpush2.msra.mxu0 0.0
  %371 = vmatprep.subr.mxu0 0.0
  %372 = vmatpush2.msra.mxu0 0.0
  %373 = vmatprep.subr.mxu0 0.0
  %374 = vmatpush2.msra.mxu0 0.0
  %375 = vmatprep.subr.mxu0 0.0
  %376 = vmatpush2.msra.mxu0 0.0
  %377 = vmatprep.subr.mxu0 0.0
  %378 = vmatpush2.msra.mxu0 0.0
  %379 = vmatprep.subr.mxu0 0.0
  %380 = vmatpush2.msra.mxu0 0.0
  %381 = vmatprep.subr.mxu0 0.0
  %382 = vmatpush2.msra.mxu0 0.0
  %383 = vmatprep.subr.mxu0 0.0
  %384 = vmatpush2.msra.mxu0 0.0
  %385 = vmatprep.subr.mxu0 0.0
  %386 = vmatpush2.msra.mxu0 0.0
  %387 = vmatprep.subr.mxu0 0.0
  %388 = vmatpush2.msra.mxu0 0.0
  %389 = vmatprep.subr.mxu0 0.0
  %390 = vmatpush2.msra.mxu0 0.0
  %391 = vmatprep.subr.mxu0 0.0
  %392 = vmatpush2.msra.mxu0 0.0
  %393 = vmatprep.subr.mxu0 0.0
  %394 = vmatpush2.msra.mxu0 0.0
  %395 = vmatprep.subr.mxu0 0.0
  %396 = vmatpush2.msra.mxu0 0.0
  %397 = vmatprep.subr.mxu0 0.0
  %398 = vmatpush2.msra.mxu0 0.0
  %399 = vmatprep.mubr.f32.mxu0 0.0
  %400 = vmatmul.mubr.f32.gmra.mxu0 %v165
  %v401 = vpop.f32.mrf.mxu0
  %v402 = vadd.f32 0.0, %v401
  %v403 = vpop.f32.mrf.mxu0
  %404 = vdwg.mxu0
  %v405 = vsel %vm241, %v402, 0.0
  %406 = vadd.xlane.f32.xlu0 %v405
  %v407 = vpop.xlane.xlu0 %406
  %409 = vrot.lane.b32.xlu0 %v402, 112
  %v410 = vpop.permute.xlu0 %409
  %v412 = vsel %vm241, %v410, 0.0
  %413 = vadd.xlane.f32.xlu0 %v412
  %v414 = vpop.xlane.xlu0 %413
  %v415 = vsel %vm105, %v407, %v414
  %v416 = vmul.f32 %v415, 0.0625
  %v417 = vadd.f32 %v416, 1e-05
  %v418 = vrsqrt.pop %v417
  %v420 = vsel %vm167, %v418, 0
  %422 = vmatprep.subr.mxu0 0.0
  %423 = vmatpush1.msra.mxu0 0.0
  %424 = vmatprep.subr.mxu0 0.0
  %425 = vmatpush1.msra.mxu0 0.0
  %426 = vmatprep.subr.mxu0 0.0
  %427 = vmatpush1.msra.mxu0 0.0
  %428 = vmatprep.subr.mxu0 0.0
  %429 = vmatpush1.msra.mxu0 0.0
  %430 = vmatprep.subr.mxu0 0.0
  %431 = vmatpush1.msra.mxu0 0.0
  %432 = vmatprep.subr.mxu0 0.0
  %433 = vmatpush1.msra.mxu0 0.0
  %434 = vmatprep.subr.mxu0 0.0
  %435 = vmatpush1.msra.mxu0 0.0
  %436 = vmatprep.subr.mxu0 0.0
  %437 = vmatpush1.msra.mxu0 0.0
  %438 = vmatprep.subr.mxu0 0.0
  %439 = vmatpush1.msra.mxu0 0.0
  %440 = vmatprep.subr.mxu0 0.0
  %441 = vmatpush1.msra.mxu0 0.0
  %442 = vmatprep.subr.mxu0 0.0
  %443 = vmatpush1.msra.mxu0 0.0
  %444 = vmatprep.subr.mxu0 0.0
  %445 = vmatpush1.msra.mxu0 0.0
  %446 = vmatprep.subr.mxu0 0.0
  %447 = vmatpush1.msra.mxu0 0.0
  %448 = vmatprep.subr.mxu0 0.0
  %449 = vmatpush1.msra.mxu0 0.0
  %450 = vmatprep.subr.mxu0 0.0
  %451 = vmatpush1.msra.mxu0 0.0
  %452 = vmatprep.subr.mxu0 0.0
  %453 = vmatpush1.msra.mxu0 %v420
  %454 = vmatprep.subr.mxu0 0.0
  %455 = vmatpush2.msra.mxu0 0.0
  %456 = vmatprep.subr.mxu0 0.0
  %457 = vmatpush2.msra.mxu0 0.0
  %458 = vmatprep.subr.mxu0 0.0
  %459 = vmatpush2.msra.mxu0 0.0
  %460 = vmatprep.subr.mxu0 0.0
  %461 = vmatpush2.msra.mxu0 0.0
  %462 = vmatprep.subr.mxu0 0.0
  %463 = vmatpush2.msra.mxu0 0.0
  %464 = vmatprep.subr.mxu0 0.0
  %465 = vmatpush2.msra.mxu0 0.0
  %466 = vmatprep.subr.mxu0 0.0
  %467 = vmatpush2.msra.mxu0 0.0
  %468 = vmatprep.subr.mxu0 0.0
  %469 = vmatpush2.msra.mxu0 0.0
  %470 = vmatprep.subr.mxu0 0.0
  %471 = vmatpush2.msra.mxu0 0.0
  %472 = vmatprep.subr.mxu0 0.0
  %473 = vmatpush2.msra.mxu0 0.0
  %474 = vmatprep.subr.mxu0 0.0
  %475 = vmatpush2.msra.mxu0 0.0
  %476 = vmatprep.subr.mxu0 0.0
  %477 = vmatpush2.msra.mxu0 0.0
  %478 = vmatprep.subr.mxu0 0.0
  %479 = vmatpush2.msra.mxu0 0.0
  %480 = vmatprep.subr.mxu0 0.0
  %481 = vmatpush2.msra.mxu0 0.0
  %482 = vmatprep.subr.mxu0 0.0
  %483 = vmatpush2.msra.mxu0 0.0
  %484 = vmatprep.subr.mxu0 0.0
  %485 = vmatpush2.msra.mxu0 0.0
  %486 = vmatprep.mubr.f32.mxu0 0.0
  %487 = vmatmul.mubr.f32.gmra.mxu0 %v255
  %v488 = vpop.f32.mrf.mxu0
  %v489 = vadd.f32 0.0, %v488
  %v490 = vpop.f32.mrf.mxu0
  %491 = vdwg.mxu0
  %v492 = vmul.f32 %v330, %v489
  %v493 = vlaneseq
  %v494 = vshrl.u32 %v493, 7
  %v495 = vsub.s32 0, %v494
  %v496 = vrot.slane %v35, %v495
  %v497 = vmul.f32 %v492, %v496
  %v498 = vlaneseq
  %v499 = vshrl.u32 %v498, 7
  %v500 = vsub.s32 0, %v499
  %v501 = vrot.slane %v36, %v500
  %v502 = vadd.f32 %v497, %v501
  %v503 = vmax.f32 %v502, 0.0
  %v505 = vsel %vm167, %v503, 0
  %507 = vmatprep.subr.mxu0 0.0
  %508 = vmatpush1.msra.mxu0 0.0
  %509 = vmatprep.subr.mxu0 0.0
  %510 = vmatpush1.msra.mxu0 0.0
  %511 = vmatprep.subr.mxu0 0.0
  %512 = vmatpush1.msra.mxu0 0.0
  %513 = vmatprep.subr.mxu0 0.0
  %514 = vmatpush1.msra.mxu0 0.0
  %515 = vmatprep.subr.mxu0 0.0
  %516 = vmatpush1.msra.mxu0 0.0
  %517 = vmatprep.subr.mxu0 0.0
  %518 = vmatpush1.msra.mxu0 0.0
  %519 = vmatprep.subr.mxu0 0.0
  %520 = vmatpush1.msra.mxu0 0.0
  %521 = vmatprep.subr.mxu0 0.0
  %522 = vmatpush1.msra.mxu0 0.0
  %523 = vmatprep.subr.mxu0 0.0
  %524 = vmatpush1.msra.mxu0 0.0
  %525 = vmatprep.subr.mxu0 0.0
  %526 = vmatpush1.msra.mxu0 0.0
  %527 = vmatprep.subr.mxu0 0.0
  %528 = vmatpush1.msra.mxu0 0.0
  %529 = vmatprep.subr.mxu0 0.0
  %530 = vmatpush1.msra.mxu0 0.0
  %531 = vmatprep.subr.mxu0 0.0
  %532 = vmatpush1.msra.mxu0 0.0
  %533 = vmatprep.subr.mxu0 0.0
  %534 = vmatpush1.msra.mxu0 0.0
  %535 = vmatprep.subr.mxu0 0.0
  %536 = vmatpush1.msra.mxu0 0.0
  %537 = vmatprep.subr.mxu0 0.0
  %538 = vmatpush1.msra.mxu0 %v505
  %539 = vmatprep.subr.mxu0 0.0
  %540 = vmatpush2.msra.mxu0 0.0
  %541 = vmatprep.subr.mxu0 0.0
  %542 = vmatpush2.msra.mxu0 0.0
  %543 = vmatprep.subr.mxu0 0.0
  %544 = vmatpush2.msra.mxu0 0.0
  %545 = vmatprep.subr.mxu0 0.0
  %546 = vmatpush2.msra.mxu0 0.0
  %547 = vmatprep.subr.mxu0 0.0
  %548 = vmatpush2.msra.mxu0 0.0
  %549 = vmatprep.subr.mxu0 0.0
  %550 = vmatpush2.msra.mxu0 0.0
  %551 = vmatprep.subr.mxu0 0.0
  %552 = vmatpush2.msra.mxu0 0.0
  %553 = vmatprep.subr.mxu0 0.0
  %554 = vmatpush2.msra.mxu0 0.0
  %555 = vmatprep.subr.mxu0 0.0
  %556 = vmatpush2.msra.mxu0 0.0
  %557 = vmatprep.subr.mxu0 0.0
  %558 = vmatpush2.msra.mxu0 0.0
  %559 = vmatprep.subr.mxu0 0.0
  %560 = vmatpush2.msra.mxu0 0.0
  %561 = vmatprep.subr.mxu0 0.0
  %562 = vmatpush2.msra.mxu0 0.0
  %563 = vmatprep.subr.mxu0 0.0
  %564 = vmatpush2.msra.mxu0 0.0
  %565 = vmatprep.subr.mxu0 0.0
  %566 = vmatpush2.msra.mxu0 0.0
  %567 = vmatprep.subr.mxu0 0.0
  %568 = vmatpush2.msra.mxu0 0.0
  %569 = vmatprep.subr.mxu0 0.0
  %570 = vmatpush2.msra.mxu0 0.0
  %571 = vmatprep.mubr.f32.mxu0 0.0
  %572 = vmatmul.mubr.f32.gmra.mxu0 %v165
  %v573 = vpop.f32.mrf.mxu0
  %v574 = vadd.f32 0.0, %v573
  %v575 = vpop.f32.mrf.mxu0
  %576 = vdwg.mxu0
  %vm577 = vcmask 257024
  %578 = vst.msk [vmem:[%s3] sm:$0xf] %vm577, %v574
  // Predicated region
  $region14: #{cmdtop_forward.3} parent=0 // pred_check
    _
  $region15: #{cmdtop_forward.3} parent=0 // pred_check_branch
    %580 = sbr.rel (0) target = $region17
  $region16: #{cmdtop_forward.3} parent=0 // pred_region
    _
  $region17: #{cmdtop_forward.3} parent=0 // pred_fallthru
    _
  // Predicated region
  $region18: #{cmdtop_forward.3} parent=0 // pred_check
    _
  $region19: #{cmdtop_forward.3} parent=0 // pred_check_branch
    %582 = sbr.rel (0) target = $region21
  $region20: #{cmdtop_forward.3} parent=0 // pred_region
    _
  $region21: #{cmdtop_forward.3} parent=0 // pred_fallthru
    _

// kernel: cmdtop_forward.2
$region0: #{cmdtop_forward.2}
  #allocation0 [shape = 'u32[]', space=smem, size = 0x4, offset = 0x4, fixed_abs, tag = 'smem constant byte address 0x4 - core index']
  #allocation1 [shape = 'u32[144,128]{1,0:T(1,128)}', space=vmem, size = 0x12000, scoped, tag = 'internal scratch']
  %s0 = inlined_call_operand.vmem [shape: bf16[16,144], index: 0, kind: input, shape index: {}]
  %s1 = inlined_call_operand.vmem [shape: bf16[144,16], index: 1, kind: input, shape index: {}]
  %s2 = inlined_call_operand.vmem [shape: f32[3,16], index: 2, kind: input, shape index: {}]
  %s3 = inlined_call_operand.vmem [shape: bf16[16,16], index: 3, kind: output, shape index: {}]
  %s4 = sld [smem:[#allocation0]]
  $region22: #{cmdtop_forward.2} parent=0
    _
  %s6 = ssub.s32 1, %s4
  %s7 = scalar_select 0, %s6, %s4
  // Predicated region
  $region2: #{cmdtop_forward.2} parent=0 // pred_check
    _
  $region3: #{cmdtop_forward.2} parent=0 // pred_check_branch
    %9 = sbr.rel (0) target = $region5
  $region4: #{cmdtop_forward.2} parent=0 // pred_region
    _
  $region5: #{cmdtop_forward.2} parent=0 // pred_fallthru
    _
  // Predicated region
  $region6: #{cmdtop_forward.2} parent=0 // pred_check
    _
  $region7: #{cmdtop_forward.2} parent=0 // pred_check_branch
    %11 = sbr.rel (0) target = $region9
  $region8: #{cmdtop_forward.2} parent=0 // pred_region
    _
  $region9: #{cmdtop_forward.2} parent=0 // pred_fallthru
    _
  // Predicated region
  $region10: #{cmdtop_forward.2} parent=0 // pred_check
    _
  $region11: #{cmdtop_forward.2} parent=0 // pred_check_branch
    %13 = sbr.rel (0) target = $region13
  $region12: #{cmdtop_forward.2} parent=0 // pred_region
    _
  $region13: #{cmdtop_forward.2} parent=0 // pred_fallthru
    _
  %v15 = vld [vmem:[%s0] sm:$0xff]
  %v16 = vld [vmem:[%s0 + $0x8] sm:$0xff]
  %v17 = vld [vmem:[%s1] sm:$0xf]
  %v18 = vld [vmem:[%s1 + $0x4] sm:$0xf]
  %v19 = vld [vmem:[%s1 + $0x8] sm:$0xf]
  %v20 = vld [vmem:[%s1 + $0xc] sm:$0xf]
  %v21 = vld [vmem:[%s1 + $0x10] sm:$0xf]
  %v22 = vld [vmem:[%s1 + $0x14] sm:$0xf]
  %v23 = vld [vmem:[%s1 + $0x18] sm:$0xf]
  %v24 = vld [vmem:[%s1 + $0x1c] sm:$0xf]
  %v25 = vld [vmem:[%s1 + $0x20] sm:$0xf]
  %v26 = vld [vmem:[%s1 + $0x24] sm:$0xf]
  %v27 = vld [vmem:[%s1 + $0x28] sm:$0xf]
  %v28 = vld [vmem:[%s1 + $0x2c] sm:$0xf]
  %v29 = vld [vmem:[%s1 + $0x30] sm:$0xf]
  %v30 = vld [vmem:[%s1 + $0x34] sm:$0xf]
  %v31 = vld [vmem:[%s1 + $0x38] sm:$0xf]
  %v32 = vld [vmem:[%s1 + $0x3c] sm:$0xf]
  %v33 = vld [vmem:[%s1 + $0x40] sm:$0xf]
  %v34 = vld [vmem:[%s1 + $0x44] sm:$0xf]
  %v35 = vld [vmem:[%s2] sm:$0x1]
  %v36 = vld [vmem:[%s2 + $0x1] sm:$0x1]
  %v37 = vld [vmem:[%s2 + $0x2] sm:$0x1]
  %v38 = vlaneseq
  %v39 = vshrl.u32 %v38, 7
  %v40 = vsub.s32 0, %v39
  %v41 = vrot.slane %v35, %v40
  %v44 = vunpack.c.l.b16 %v15
  %v45 = vunpack.c.h.b16 %v15
  %v46 = vunpack.c.l.b16 %v16
  %v47 = vunpack.c.h.b16 %v16
  %v48 = vpack.c.b16 %v46, %v44
  %v49 = vpack.c.b16 %v47, %v45
  %v69 = vunpack.c.l.b16 %v17
  %v70 = vunpack.c.l.b16 %v18
  %v71 = vunpack.c.l.b16 %v19
  %v72 = vunpack.c.l.b16 %v20
  %v73 = vunpack.c.l.b16 %v21
  %v74 = vunpack.c.l.b16 %v22
  %v75 = vunpack.c.l.b16 %v23
  %v76 = vunpack.c.l.b16 %v24
  %v77 = vunpack.c.l.b16 %v25
  %v78 = vunpack.c.l.b16 %v26
  %v79 = vunpack.c.l.b16 %v27
  %v80 = vunpack.c.l.b16 %v28
  %v81 = vunpack.c.l.b16 %v29
  %v82 = vunpack.c.l.b16 %v30
  %v83 = vunpack.c.l.b16 %v31
  %v84 = vunpack.c.l.b16 %v32
  %v85 = vunpack.c.l.b16 %v33
  %v86 = vunpack.c.l.b16 %v34
  %v87 = vpack.c.b16 %v70, %v69
  %v88 = vpack.c.b16 %v72, %v71
  %v89 = vpack.c.b16 %v74, %v73
  %v90 = vpack.c.b16 %v76, %v75
  %v91 = vpack.c.b16 %v78, %v77
  %v92 = vpack.c.b16 %v80, %v79
  %v93 = vpack.c.b16 %v82, %v81
  %v94 = vpack.c.b16 %v84, %v83
  %v95 = vpack.c.b16 %v86, %v85
  %vm105 = vcmask 130048
  %v107 = vsel %vm105, %v49, 0
  %109 = vmatprep.subr.bf16.mxu0 0
  %110 = vmatpush1.bf16.msra.mxu0 %v94
  %111 = vmatprep.subr.bf16.mxu0 0
  %112 = vmatpush1.bf16.msra.mxu0 %v93
  %113 = vmatprep.subr.bf16.mxu0 0
  %114 = vmatpush1.bf16.msra.mxu0 %v92
  %115 = vmatprep.subr.bf16.mxu0 0
  %116 = vmatpush1.bf16.msra.mxu0 %v91
  %117 = vmatprep.subr.bf16.mxu0 0
  %118 = vmatpush1.bf16.msra.mxu0 %v90
  %119 = vmatprep.subr.bf16.mxu0 0
  %120 = vmatpush1.bf16.msra.mxu0 %v89
  %121 = vmatprep.subr.bf16.mxu0 0
  %122 = vmatpush1.bf16.msra.mxu0 %v88
  %123 = vmatprep.subr.bf16.mxu0 0
  %124 = vmatpush1.bf16.msra.mxu0 %v87
  %125 = vmatprep.subr.bf16.mxu0 0
  %126 = vmatpush2.bf16.msra.mxu0 0
  %127 = vmatprep.subr.bf16.mxu0 0
  %128 = vmatpush2.bf16.msra.mxu0 0
  %129 = vmatprep.subr.bf16.mxu0 0
  %130 = vmatpush2.bf16.msra.mxu0 0
  %131 = vmatprep.subr.bf16.mxu0 0
  %132 = vmatpush2.bf16.msra.mxu0 0
  %133 = vmatprep.subr.bf16.mxu0 0
  %134 = vmatpush2.bf16.msra.mxu0 0
  %135 = vmatprep.subr.bf16.mxu0 0
  %136 = vmatpush2.bf16.msra.mxu0 0
  %137 = vmatprep.subr.bf16.mxu0 0
  %138 = vmatpush2.bf16.msra.mxu0 0
  %139 = vmatprep.subr.bf16.mxu0 0
  %140 = vmatpush2.bf16.msra.mxu0 %v95
  %141 = vmatprep.mubr.bf16.mxu0 %v107
  %142 = vmatmul.mubr.bf16.gmra.mxu0 %v48
  %v143 = vpop.f32.mrf.mxu0
  %v144 = vadd.f32 %v41, %v143
  %v145 = vpop.f32.mrf.mxu0
  %v146 = vpop.f32.mrf.mxu0
  %v147 = vadd.f32 %v41, %v146
  %v148 = vpop.f32.mrf.mxu0
  %149 = vdwg.mxu0
  %v150 = vlaneseq
  %v151 = vand.u32 %v150, 127
  %v152 = vlaneseq
  %v153 = vshrl.u32 %v152, 7
  %v154 = vmul.u32 %v153, 4
  %vm155 = vcmp.ge.s32.totalorder %v151, %v154
  %v156 = vadd.s32 %v154, 4
  %vm157 = vcmp.lt.s32.totalorder %v151, %v156
  %vm158 = vmand %vm155, %vm157
  %v159 = vsel %vm158, 1.0, 0.0
  %v160 = vadd.s32 %v153, 8
  %v161 = vmul.u32 %v151, 4
  %vm162 = vcmp.ge.s32.totalorder %v153, %v161
  %vm163 = vcmp.ge.s32.totalorder %v160, %v161
  %v164 = vadd.s32 %v161, 4
  %vm165 = vcmp.lt.s32.totalorder %v153, %v164
  %vm166 = vcmp.lt.s32.totalorder %v160, %v164
  %vm167 = vmand %vm162, %vm165
  %vm168 = vmand %vm163, %vm166
  %v169 = vsel %vm167, 1.0, 0.0
  %v170 = vsel %vm168, 1.0, 0.0
  %v172 = vsel %vm105, %v159, 0
  %174 = vmatprep.subr.mxu0 0.0
  %175 = vmatpush1.msra.mxu0 0.0
  %176 = vmatprep.subr.mxu0 0.0
  %177 = vmatpush1.msra.mxu0 0.0
  %178 = vmatprep.subr.mxu0 0.0
  %179 = vmatpush1.msra.mxu0 0.0
  %180 = vmatprep.subr.mxu0 0.0
  %181 = vmatpush1.msra.mxu0 0.0
  %182 = vmatprep.subr.mxu0 0.0
  %183 = vmatpush1.msra.mxu0 0.0
  %184 = vmatprep.subr.mxu0 0.0
  %185 = vmatpush1.msra.mxu0 0.0
  %186 = vmatprep.subr.mxu0 0.0
  %187 = vmatpush1.msra.mxu0 0.0
  %188 = vmatprep.subr.mxu0 0.0
  %189 = vmatpush1.msra.mxu0 0.0
  %190 = vmatprep.subr.mxu0 0.0
  %191 = vmatpush1.msra.mxu0 0.0
  %192 = vmatprep.subr.mxu0 0.0
  %193 = vmatpush1.msra.mxu0 0.0
  %194 = vmatprep.subr.mxu0 0.0
  %195 = vmatpush1.msra.mxu0 0.0
  %196 = vmatprep.subr.mxu0 0.0
  %197 = vmatpush1.msra.mxu0 0.0
  %198 = vmatprep.subr.mxu0 0.0
  %199 = vmatpush1.msra.mxu0 0.0
  %200 = vmatprep.subr.mxu0 0.0
  %201 = vmatpush1.msra.mxu0 0.0
  %202 = vmatprep.subr.mxu0 0.0
  %203 = vmatpush1.msra.mxu0 %v147
  %204 = vmatprep.subr.mxu0 0.0
  %205 = vmatpush1.msra.mxu0 %v144
  %206 = vmatprep.subr.mxu0 0.0
  %207 = vmatpush2.msra.mxu0 0.0
  %208 = vmatprep.subr.mxu0 0.0
  %209 = vmatpush2.msra.mxu0 0.0
  %210 = vmatprep.subr.mxu0 0.0
  %211 = vmatpush2.msra.mxu0 0.0
  %212 = vmatprep.subr.mxu0 0.0
  %213 = vmatpush2.msra.mxu0 0.0
  %214 = vmatprep.subr.mxu0 0.0
  %215 = vmatpush2.msra.mxu0 0.0
  %216 = vmatprep.subr.mxu0 0.0
  %217 = vmatpush2.msra.mxu0 0.0
  %218 = vmatprep.subr.mxu0 0.0
  %219 = vmatpush2.msra.mxu0 0.0
  %220 = vmatprep.subr.mxu0 0.0
  %221 = vmatpush2.msra.mxu0 0.0
  %222 = vmatprep.subr.mxu0 0.0
  %223 = vmatpush2.msra.mxu0 0.0
  %224 = vmatprep.subr.mxu0 0.0
  %225 = vmatpush2.msra.mxu0 0.0
  %226 = vmatprep.subr.mxu0 0.0
  %227 = vmatpush2.msra.mxu0 0.0
  %228 = vmatprep.subr.mxu0 0.0
  %229 = vmatpush2.msra.mxu0 0.0
  %230 = vmatprep.subr.mxu0 0.0
  %231 = vmatpush2.msra.mxu0 0.0
  %232 = vmatprep.subr.mxu0 0.0
  %233 = vmatpush2.msra.mxu0 0.0
  %234 = vmatprep.subr.mxu0 0.0
  %235 = vmatpush2.msra.mxu0 0.0
  %236 = vmatprep.subr.mxu0 0.0
  %237 = vmatpush2.msra.mxu0 0.0
  %238 = vmatprep.mubr.f32.mxu0 0.0
  %239 = vmatmul.mubr.f32.gmra.mxu0 %v172
  %v240 = vpop.f32.mrf.mxu0
  %v241 = vadd.f32 0.0, %v240
  %v242 = vpop.f32.mrf.mxu0
  %243 = vdwg.mxu0
  %vm244 = vcmask 125952
  %v245 = vsel %vm244, %v241, 0.0
  %246 = vadd.xlane.f32.xlu0 %v245
  %v247 = vpop.xlane.xlu0 %246
  %v248 = vmul.f32 %v247, 0.015625
  %vm249 = vcmask 31744
  %v251 = vsel %vm249, %v169, 0
  %v254 = vsel %vm249, %v170, 0
  %vm256 = vcmask 1043456
  %v258 = vsel %vm256, %v248, 0
  %260 = vmatprep.subr.mxu0 0.0
  %261 = vmatpush1.msra.mxu0 0.0
  %262 = vmatprep.subr.mxu0 0.0
  %263 = vmatpush1.msra.mxu0 0.0
  %264 = vmatprep.subr.mxu0 0.0
  %265 = vmatpush1.msra.mxu0 0.0
  %266 = vmatprep.subr.mxu0 0.0
  %267 = vmatpush1.msra.mxu0 0.0
  %268 = vmatprep.subr.mxu0 0.0
  %269 = vmatpush1.msra.mxu0 0.0
  %270 = vmatprep.subr.mxu0 0.0
  %271 = vmatpush1.msra.mxu0 0.0
  %272 = vmatprep.subr.mxu0 0.0
  %273 = vmatpush1.msra.mxu0 0.0
  %274 = vmatprep.subr.mxu0 0.0
  %275 = vmatpush1.msra.mxu0 0.0
  %276 = vmatprep.subr.mxu0 0.0
  %277 = vmatpush1.msra.mxu0 0.0
  %278 = vmatprep.subr.mxu0 0.0
  %279 = vmatpush1.msra.mxu0 0.0
  %280 = vmatprep.subr.mxu0 0.0
  %281 = vmatpush1.msra.mxu0 0.0
  %282 = vmatprep.subr.mxu0 0.0
  %283 = vmatpush1.msra.mxu0 0.0
  %284 = vmatprep.subr.mxu0 0.0
  %285 = vmatpush1.msra.mxu0 0.0
  %286 = vmatprep.subr.mxu0 0.0
  %287 = vmatpush1.msra.mxu0 0.0
  %288 = vmatprep.subr.mxu0 0.0
  %289 = vmatpush1.msra.mxu0 0.0
  %290 = vmatprep.subr.mxu0 0.0
  %291 = vmatpush1.msra.mxu0 %v258
  %292 = vmatprep.subr.mxu0 0.0
  %293 = vmatpush2.msra.mxu0 0.0
  %294 = vmatprep.subr.mxu0 0.0
  %295 = vmatpush2.msra.mxu0 0.0
  %296 = vmatprep.subr.mxu0 0.0
  %297 = vmatpush2.msra.mxu0 0.0
  %298 = vmatprep.subr.mxu0 0.0
  %299 = vmatpush2.msra.mxu0 0.0
  %300 = vmatprep.subr.mxu0 0.0
  %301 = vmatpush2.msra.mxu0 0.0
  %302 = vmatprep.subr.mxu0 0.0
  %303 = vmatpush2.msra.mxu0 0.0
  %304 = vmatprep.subr.mxu0 0.0
  %305 = vmatpush2.msra.mxu0 0.0
  %306 = vmatprep.subr.mxu0 0.0
  %307 = vmatpush2.msra.mxu0 0.0
  %308 = vmatprep.subr.mxu0 0.0
  %309 = vmatpush2.msra.mxu0 0.0
  %310 = vmatprep.subr.mxu0 0.0
  %311 = vmatpush2.msra.mxu0 0.0
  %312 = vmatprep.subr.mxu0 0.0
  %313 = vmatpush2.msra.mxu0 0.0
  %314 = vmatprep.subr.mxu0 0.0
  %315 = vmatpush2.msra.mxu0 0.0
  %316 = vmatprep.subr.mxu0 0.0
  %317 = vmatpush2.msra.mxu0 0.0
  %318 = vmatprep.subr.mxu0 0.0
  %319 = vmatpush2.msra.mxu0 0.0
  %320 = vmatprep.subr.mxu0 0.0
  %321 = vmatpush2.msra.mxu0 0.0
  %322 = vmatprep.subr.mxu0 0.0
  %323 = vmatpush2.msra.mxu0 0.0
  %324 = vmatprep.mubr.f32.mxu0 0.0
  %325 = vmatmul.mubr.f32.gmra.mxu0 %v251
  %v326 = vpop.f32.mrf.mxu0
  %v327 = vadd.f32 0.0, %v326
  %v328 = vpop.f32.mrf.mxu0
  %329 = vmatprep.mubr.f32.mxu0 0.0
  %330 = vmatmul.mubr.f32.gmra.mxu0 %v254
  %v331 = vpop.f32.mrf.mxu0
  %v332 = vadd.f32 0.0, %v331
  %v333 = vpop.f32.mrf.mxu0
  %334 = vdwg.mxu0
  %v335 = vsub.f32 %v144, %v327
  %v336 = vsub.f32 %v147, %v332
  %v337 = vmul.f32 %v335, %v335
  %v338 = vmul.f32 %v336, %v336
  %339 = vmatprep.subr.mxu0 0.0
  %340 = vmatpush1.msra.mxu0 0.0
  %341 = vmatprep.subr.mxu0 0.0
  %342 = vmatpush1.msra.mxu0 0.0
  %343 = vmatprep.subr.mxu0 0.0
  %344 = vmatpush1.msra.mxu0 0.0
  %345 = vmatprep.subr.mxu0 0.0
  %346 = vmatpush1.msra.mxu0 0.0
  %347 = vmatprep.subr.mxu0 0.0
  %348 = vmatpush1.msra.mxu0 0.0
  %349 = vmatprep.subr.mxu0 0.0
  %350 = vmatpush1.msra.mxu0 0.0
  %351 = vmatprep.subr.mxu0 0.0
  %352 = vmatpush1.msra.mxu0 0.0
  %353 = vmatprep.subr.mxu0 0.0
  %354 = vmatpush1.msra.mxu0 0.0
  %355 = vmatprep.subr.mxu0 0.0
  %356 = vmatpush1.msra.mxu0 0.0
  %357 = vmatprep.subr.mxu0 0.0
  %358 = vmatpush1.msra.mxu0 0.0
  %359 = vmatprep.subr.mxu0 0.0
  %360 = vmatpush1.msra.mxu0 0.0
  %361 = vmatprep.subr.mxu0 0.0
  %362 = vmatpush1.msra.mxu0 0.0
  %363 = vmatprep.subr.mxu0 0.0
  %364 = vmatpush1.msra.mxu0 0.0
  %365 = vmatprep.subr.mxu0 0.0
  %366 = vmatpush1.msra.mxu0 0.0
  %367 = vmatprep.subr.mxu0 0.0
  %368 = vmatpush1.msra.mxu0 %v338
  %369 = vmatprep.subr.mxu0 0.0
  %370 = vmatpush1.msra.mxu0 %v337
  %371 = vmatprep.subr.mxu0 0.0
  %372 = vmatpush2.msra.mxu0 0.0
  %373 = vmatprep.subr.mxu0 0.0
  %374 = vmatpush2.msra.mxu0 0.0
  %375 = vmatprep.subr.mxu0 0.0
  %376 = vmatpush2.msra.mxu0 0.0
  %377 = vmatprep.subr.mxu0 0.0
  %378 = vmatpush2.msra.mxu0 0.0
  %379 = vmatprep.subr.mxu0 0.0
  %380 = vmatpush2.msra.mxu0 0.0
  %381 = vmatprep.subr.mxu0 0.0
  %382 = vmatpush2.msra.mxu0 0.0
  %383 = vmatprep.subr.mxu0 0.0
  %384 = vmatpush2.msra.mxu0 0.0
  %385 = vmatprep.subr.mxu0 0.0
  %386 = vmatpush2.msra.mxu0 0.0
  %387 = vmatprep.subr.mxu0 0.0
  %388 = vmatpush2.msra.mxu0 0.0
  %389 = vmatprep.subr.mxu0 0.0
  %390 = vmatpush2.msra.mxu0 0.0
  %391 = vmatprep.subr.mxu0 0.0
  %392 = vmatpush2.msra.mxu0 0.0
  %393 = vmatprep.subr.mxu0 0.0
  %394 = vmatpush2.msra.mxu0 0.0
  %395 = vmatprep.subr.mxu0 0.0
  %396 = vmatpush2.msra.mxu0 0.0
  %397 = vmatprep.subr.mxu0 0.0
  %398 = vmatpush2.msra.mxu0 0.0
  %399 = vmatprep.subr.mxu0 0.0
  %400 = vmatpush2.msra.mxu0 0.0
  %401 = vmatprep.subr.mxu0 0.0
  %402 = vmatpush2.msra.mxu0 0.0
  %403 = vmatprep.mubr.f32.mxu0 0.0
  %404 = vmatmul.mubr.f32.gmra.mxu0 %v172
  %v405 = vpop.f32.mrf.mxu0
  %v406 = vadd.f32 0.0, %v405
  %v407 = vpop.f32.mrf.mxu0
  %408 = vdwg.mxu0
  %v409 = vsel %vm244, %v406, 0.0
  %410 = vadd.xlane.f32.xlu0 %v409
  %v411 = vpop.xlane.xlu0 %410
  %v412 = vmul.f32 %v411, 0.015625
  %v413 = vadd.f32 %v412, 1e-05
  %v414 = vrsqrt.pop %v413
  %v416 = vsel %vm256, %v414, 0
  %418 = vmatprep.subr.mxu0 0.0
  %419 = vmatpush1.msra.mxu0 0.0
  %420 = vmatprep.subr.mxu0 0.0
  %421 = vmatpush1.msra.mxu0 0.0
  %422 = vmatprep.subr.mxu0 0.0
  %423 = vmatpush1.msra.mxu0 0.0
  %424 = vmatprep.subr.mxu0 0.0
  %425 = vmatpush1.msra.mxu0 0.0
  %426 = vmatprep.subr.mxu0 0.0
  %427 = vmatpush1.msra.mxu0 0.0
  %428 = vmatprep.subr.mxu0 0.0
  %429 = vmatpush1.msra.mxu0 0.0
  %430 = vmatprep.subr.mxu0 0.0
  %431 = vmatpush1.msra.mxu0 0.0
  %432 = vmatprep.subr.mxu0 0.0
  %433 = vmatpush1.msra.mxu0 0.0
  %434 = vmatprep.subr.mxu0 0.0
  %435 = vmatpush1.msra.mxu0 0.0
  %436 = vmatprep.subr.mxu0 0.0
  %437 = vmatpush1.msra.mxu0 0.0
  %438 = vmatprep.subr.mxu0 0.0
  %439 = vmatpush1.msra.mxu0 0.0
  %440 = vmatprep.subr.mxu0 0.0
  %441 = vmatpush1.msra.mxu0 0.0
  %442 = vmatprep.subr.mxu0 0.0
  %443 = vmatpush1.msra.mxu0 0.0
  %444 = vmatprep.subr.mxu0 0.0
  %445 = vmatpush1.msra.mxu0 0.0
  %446 = vmatprep.subr.mxu0 0.0
  %447 = vmatpush1.msra.mxu0 0.0
  %448 = vmatprep.subr.mxu0 0.0
  %449 = vmatpush1.msra.mxu0 %v416
  %450 = vmatprep.subr.mxu0 0.0
  %451 = vmatpush2.msra.mxu0 0.0
  %452 = vmatprep.subr.mxu0 0.0
  %453 = vmatpush2.msra.mxu0 0.0
  %454 = vmatprep.subr.mxu0 0.0
  %455 = vmatpush2.msra.mxu0 0.0
  %456 = vmatprep.subr.mxu0 0.0
  %457 = vmatpush2.msra.mxu0 0.0
  %458 = vmatprep.subr.mxu0 0.0
  %459 = vmatpush2.msra.mxu0 0.0
  %460 = vmatprep.subr.mxu0 0.0
  %461 = vmatpush2.msra.mxu0 0.0
  %462 = vmatprep.subr.mxu0 0.0
  %463 = vmatpush2.msra.mxu0 0.0
  %464 = vmatprep.subr.mxu0 0.0
  %465 = vmatpush2.msra.mxu0 0.0
  %466 = vmatprep.subr.mxu0 0.0
  %467 = vmatpush2.msra.mxu0 0.0
  %468 = vmatprep.subr.mxu0 0.0
  %469 = vmatpush2.msra.mxu0 0.0
  %470 = vmatprep.subr.mxu0 0.0
  %471 = vmatpush2.msra.mxu0 0.0
  %472 = vmatprep.subr.mxu0 0.0
  %473 = vmatpush2.msra.mxu0 0.0
  %474 = vmatprep.subr.mxu0 0.0
  %475 = vmatpush2.msra.mxu0 0.0
  %476 = vmatprep.subr.mxu0 0.0
  %477 = vmatpush2.msra.mxu0 0.0
  %478 = vmatprep.subr.mxu0 0.0
  %479 = vmatpush2.msra.mxu0 0.0
  %480 = vmatprep.subr.mxu0 0.0
  %481 = vmatpush2.msra.mxu0 0.0
  %482 = vmatprep.mubr.f32.mxu0 0.0
  %483 = vmatmul.mubr.f32.gmra.mxu0 %v251
  %v484 = vpop.f32.mrf.mxu0
  %v485 = vadd.f32 0.0, %v484
  %v486 = vpop.f32.mrf.mxu0
  %487 = vmatprep.mubr.f32.mxu0 0.0
  %488 = vmatmul.mubr.f32.gmra.mxu0 %v254
  %v489 = vpop.f32.mrf.mxu0
  %v490 = vadd.f32 0.0, %v489
  %v491 = vpop.f32.mrf.mxu0
  %492 = vdwg.mxu0
  %v493 = vmul.f32 %v335, %v485
  %v494 = vmul.f32 %v336, %v490
  %v495 = vlaneseq
  %v496 = vshrl.u32 %v495, 7
  %v497 = vsub.s32 0, %v496
  %v498 = vrot.slane %v36, %v497
  %v499 = vmul.f32 %v493, %v498
  %v500 = vmul.f32 %v494, %v498
  %v501 = vlaneseq
  %v502 = vshrl.u32 %v501, 7
  %v503 = vsub.s32 0, %v502
  %v504 = vrot.slane %v37, %v503
  %v505 = vadd.f32 %v499, %v504
  %v506 = vadd.f32 %v500, %v504
  %v507 = vmax.f32 %v505, 0.0
  %v508 = vmax.f32 %v506, 0.0
  %v509 = vpack.c.bf16 %v508, %v507
  %v511 = vunpack.c.l.b16 %v509
  %v512 = vunpack.c.h.b16 %v509
  %v513 = vpack.c.b16 %v511, %v511
  %v514 = vpack.c.b16 %v512, %v512
  %517 = vst.msk [vmem:[%s3] sm:$0xf] %vm244, %v513
  %518 = vst.msk [vmem:[%s3 + $0x4] sm:$0xf] %vm244, %v514
  // Predicated region
  $region14: #{cmdtop_forward.2} parent=0 // pred_check
    _
  $region15: #{cmdtop_forward.2} parent=0 // pred_check_branch
    %520 = sbr.rel (0) target = $region17
  $region16: #{cmdtop_forward.2} parent=0 // pred_region
    _
  $region17: #{cmdtop_forward.2} parent=0 // pred_fallthru
    _
  // Predicated region
  $region18: #{cmdtop_forward.2} parent=0 // pred_check
    _
  $region19: #{cmdtop_forward.2} parent=0 // pred_check_branch
    %522 = sbr.rel (0) target = $region21
  $region20: #{cmdtop_forward.2} parent=0 // pred_region
    _
  $region21: #{cmdtop_forward.2} parent=0 // pred_fallthru
    _

</llo_original>
